<compile_context>
chip_gen: v5e
topology: v5e:2x2
jax: 0.10.0
libtpu: 0.0.40
codegen_flags: <defaults>
</compile_context>

<pallas_src>
import jax
import jax.numpy as jnp
from jax.experimental import pallas as pl
from jax.experimental.pallas import tpu as pltpu

# ----------------------------- problem sizes -------------------------------
NUM_INNER_ITERATIONS = 8      # number of curriculum steps
GEN_BATCH = 8                 # generator_batch_size
NOISE_SIZE = 32               # noise_size
NUM_CLASSES = 10
HIDDEN = 64                   # generator hidden width
IMG_C, IMG_H, IMG_W = 1, 16, 16
IMG_FLAT = IMG_C * IMG_H * IMG_W          # 256

IN_DIM = NOISE_SIZE + NUM_CLASSES         # 42 (real contraction of layer 1)
BIAS_LANE = IN_DIM                        # constant-1 lane carrying b1

# lane-dense padded sizes
NOISE_PAD = 128               # [curriculum(32) | one-hot(10) | 1.0 | zeros(85)]
HIDDEN_PAD = 128              # hidden padded with zero columns

ROWS_TOTAL = NUM_INNER_ITERATIONS * GEN_BATCH   # 64 rows across the curriculum


def _pick_row_blocking():
    """grid=(1,), M=64 on single-TC parts; grid=(2,), M=32 only on 2-TC (v7x)."""
    try:
        kind = jax.devices()[0].device_kind.lower()
    except Exception:
        kind = ""
    if "v7" in kind:
        # TODO(synk): verify on a v7x bundle dump that "parallel" really shards
        # this axis across both TensorCores; if not, switch to CORE_PARALLEL.
        return 2, ("parallel",)
    return 1, ("arbitrary",)


NUM_ROW_BLOCKS, DIM_SEMANTICS = _pick_row_blocking()
BLOCK_ROWS = ROWS_TOTAL // NUM_ROW_BLOCKS       # 64 (v5e/v6e) or 32 (v7x)


# ------------------------------ Pallas kernel -------------------------------
def generator_kernel(noise_ref,   # (BLOCK_ROWS, NOISE_PAD)   bf16, lane-dense
                     w1_ref,      # (NOISE_PAD, HIDDEN_PAD)   bf16 (b1 folded in)
                     w2_ref,      # (HIDDEN_PAD, IMG_FLAT)    bf16
                     b2_ref,      # (1, IMG_FLAT)             f32
                     x_ref):      # (BLOCK_ROWS, IMG_FLAT)    f32
    # layer 1: bf16 x bf16 -> f32 accumulate on the MXU; bias rides lane 42.
    h = jnp.tanh(jnp.dot(noise_ref[...], w1_ref[...],
                         preferred_element_type=jnp.float32))
    # layer 2: cast activations back to bf16 for a single-pass MXU matmul.
    x = jnp.dot(h.astype(jnp.bfloat16), w2_ref[...],
                preferred_element_type=jnp.float32)
    x = jnp.tanh(x + b2_ref[...])
    x_ref[...] = x.astype(x_ref.dtype)


# ------------------------------- wrappers -----------------------------------
@jax.jit
def cgtn_forward_all(noise_pre, labels_one_hot, w1p, w2p, b2):
    """All curriculum iterations in ONE pallas_call.

    Returns (x of shape (N_it, B, C, H, W), labels_one_hot)."""
    noise_flat = noise_pre.reshape(ROWS_TOTAL, NOISE_PAD)        # (64, 128) bf16

    x_flat = pl.pallas_call(
        generator_kernel,
        grid=(NUM_ROW_BLOCKS,),
        in_specs=[
            pl.BlockSpec((BLOCK_ROWS, NOISE_PAD), lambda i: (i, 0)),
            # constant index_maps -> weights DMA'd once, stay resident in VMEM.
            # (Buffered(1) hygiene skipped: <100 KiB resident, immaterial here.)
            pl.BlockSpec((NOISE_PAD, HIDDEN_PAD), lambda i: (0, 0)),
            pl.BlockSpec((HIDDEN_PAD, IMG_FLAT), lambda i: (0, 0)),
            pl.BlockSpec((1, IMG_FLAT), lambda i: (0, 0)),
        ],
        out_specs=pl.BlockSpec((BLOCK_ROWS, IMG_FLAT), lambda i: (i, 0)),
        out_shape=jax.ShapeDtypeStruct((ROWS_TOTAL, IMG_FLAT), jnp.float32),
        compiler_params=pltpu.CompilerParams(dimension_semantics=DIM_SEMANTICS),
    )(noise_flat, w1p, w2p, b2)

    x = x_flat.reshape(NUM_INNER_ITERATIONS, GEN_BATCH, IMG_C, IMG_H, IMG_W)
    # TODO(synk): if x feeds a learner forward pass, fuse this generator into
    # that kernel to avoid the HBM round-trip of x (biggest remaining win).
    return x, labels_one_hot


@jax.jit
def cgtn_forward(it, noise_pre, labels_one_hot, w1p, w2p, b2):
    """CGTN.forward(it) -> (x NCHW, one_hot label).

    Per the perf review the single-iteration pallas_call path was removed:
    the batched kernel runs once and the per-`it` result is a free JAX slice."""
    x_all, labels_all = cgtn_forward_all(noise_pre, labels_one_hot, w1p, w2p, b2)
    it = jnp.asarray(it, jnp.int32)
    x = jax.lax.dynamic_index_in_dim(x_all, it, axis=0, keepdims=False)
    label = jax.lax.dynamic_index_in_dim(labels_all, it, axis=0, keepdims=False)
    return x, label


# --------------------------- parameter construction ------------------------
def init_params(key):
    k_curr, k_lab, k_w1, k_b1, k_w2, k_b2 = jax.random.split(key, 6)

    # curriculum ~ randn, as in the PyTorch module
    curriculum = jax.random.normal(
        k_curr, (NUM_INNER_ITERATIONS, GEN_BATCH, NOISE_SIZE), jnp.float32)

    # curriculum_labels ~ randint(10) -> one-hot float32
    labels = jax.random.randint(
        k_lab, (NUM_INNER_ITERATIONS, GEN_BATCH), 0, NUM_CLASSES, jnp.int32)
    labels_one_hot = jax.nn.one_hot(labels, NUM_CLASSES, dtype=jnp.float32)

    # deterministic synthetic generator weights (2-layer MLP)
    w1 = jax.random.normal(k_w1, (IN_DIM, HIDDEN), jnp.float32) * (1.0 / jnp.sqrt(IN_DIM))
    b1 = jax.random.normal(k_b1, (1, HIDDEN), jnp.float32) * 0.01
    w2 = jax.random.normal(k_w2, (HIDDEN, IMG_FLAT), jnp.float32) * (1.0 / jnp.sqrt(HIDDEN))
    b2 = jax.random.normal(k_b2, (1, IMG_FLAT), jnp.float32) * 0.01

    return curriculum, labels_one_hot, w1, b1, w2, b2


def prepare_kernel_params(curriculum, labels_one_hot, w1, b1, w2, b2):
    """One-time prep: pre-concat noise, fold b1, zero-pad, cast to bf16."""
    # noise slab: [curriculum | one-hot | 1.0 (bias lane) | zeros]
    noise_pre = jnp.zeros((NUM_INNER_ITERATIONS, GEN_BATCH, NOISE_PAD), jnp.float32)
    noise_pre = noise_pre.at[:, :, :NOISE_SIZE].set(curriculum)
    noise_pre = noise_pre.at[:, :, NOISE_SIZE:IN_DIM].set(labels_one_hot)
    noise_pre = noise_pre.at[:, :, BIAS_LANE].set(1.0)
    noise_pre = noise_pre.astype(jnp.bfloat16)

    # w1 padded to (128, 128) with b1 folded into the bias row.
    w1p = jnp.zeros((NOISE_PAD, HIDDEN_PAD), jnp.float32)
    w1p = w1p.at[:IN_DIM, :HIDDEN].set(w1)
    w1p = w1p.at[BIAS_LANE, :HIDDEN].set(b1[0])
    w1p = w1p.astype(jnp.bfloat16)

    # w2 padded to (128, 256); zero rows absorb the tanh(0)=0 padded hidden cols.
    w2p = jnp.zeros((HIDDEN_PAD, IMG_FLAT), jnp.float32).at[:HIDDEN, :].set(w2)
    w2p = w2p.astype(jnp.bfloat16)

    return noise_pre, w1p, w2p, b2.astype(jnp.float32)


def reference_forward(it, curriculum, labels_one_hot, w1, b1, w2, b2):
    """Pure f32 JAX reference for CGTN.forward(it)."""
    label = labels_one_hot[it]
    noise = jnp.concatenate([curriculum[it], label], axis=-1)
    h = jnp.tanh(noise @ w1 + b1)
    x = jnp.tanh(h @ w2 + b2)
    return x.reshape(GEN_BATCH, IMG_C, IMG_H, IMG_W), label


# ----------------------------------- main -----------------------------------
if __name__ == "__main__":
    key = jax.random.PRNGKey(0)
    curriculum, labels_one_hot, w1, b1, w2, b2 = init_params(key)
    noise_pre, w1p, w2p, b2p = prepare_kernel_params(
        curriculum, labels_one_hot, w1, b1, w2, b2)

    # ---- batched forward over all curriculum iterations (one pallas_call) ----
    x_all, labels_all = cgtn_forward_all(noise_pre, labels_one_hot, w1p, w2p, b2p)
    jax.block_until_ready((x_all, labels_all))
    assert x_all.shape == (NUM_INNER_ITERATIONS, GEN_BATCH, IMG_C, IMG_H, IMG_W)

    # bf16 operands + f32 accumulation -> tanh outputs agree to ~1e-2 absolute.
    TOL = 3e-2
    for chk_it in range(NUM_INNER_ITERATIONS):
        xr, lr = reference_forward(chk_it, curriculum, labels_one_hot, w1, b1, w2, b2)
        assert jnp.allclose(x_all[chk_it], xr, atol=TOL, rtol=0.0), chk_it
        assert jnp.array_equal(labels_all[chk_it], lr), chk_it

    # ---- CGTN.forward(it) semantics via the batched kernel + JAX slice ----
    it = 3
    x, label = cgtn_forward(it, noise_pre, labels_one_hot, w1p, w2p, b2p)
    jax.block_until_ready((x, label))
    x_ref, label_ref = reference_forward(it, curriculum, labels_one_hot, w1, b1, w2, b2)
    assert x.shape == (GEN_BATCH, IMG_C, IMG_H, IMG_W)
    assert label.shape == (GEN_BATCH, NUM_CLASSES)
    assert jnp.allclose(x, x_ref, atol=TOL, rtol=0.0)
    assert jnp.array_equal(label, label_ref)

    print("KERNEL_OK")
</pallas_src>

<mosaic_0001>
module attributes {stable_mosaic.version = 11 : i64} {
  func.func @generator_kernel(%arg0: i32, %arg1: memref<64x128xbf16, #tpu.memory_space<vmem>>, %arg2: memref<128x128xbf16, #tpu.memory_space<vmem>>, %arg3: memref<128x256xbf16, #tpu.memory_space<vmem>>, %arg4: memref<1x256xf32, #tpu.memory_space<vmem>>, %arg5: memref<64x256xf32, #tpu.memory_space<vmem>>) attributes {dimension_semantics = [#tpu.dimension_semantics<arbitrary>], iteration_bounds = array<i64: 1>, scalar_prefetch = 0 : i64, scratch_operands = 0 : i64, tpu.core_type = #tpu.core_type<tc>, window_params = [{transform_indices = @transform_0, window_bounds = array<i64: 64, 128>}, {pipeline_mode = #tpu.pipeline_mode<synchronous>, transform_indices = @transform_1, window_bounds = array<i64: 128, 128>}, {pipeline_mode = #tpu.pipeline_mode<synchronous>, transform_indices = @transform_2, window_bounds = array<i64: 128, 256>}, {pipeline_mode = #tpu.pipeline_mode<synchronous>, transform_indices = @transform_3, window_bounds = array<i64: 1, 256>}, {transform_indices = @transform_4, window_bounds = array<i64: 64, 256>}]} {
    %c0 = arith.constant 0 : index
    %c0_0 = arith.constant 0 : index
    %0 = vector.load %arg1[%c0, %c0_0] : memref<64x128xbf16, #tpu.memory_space<vmem>>, vector<64x128xbf16>
    %c0_1 = arith.constant 0 : index
    %c0_2 = arith.constant 0 : index
    %1 = vector.load %arg2[%c0_1, %c0_2] : memref<128x128xbf16, #tpu.memory_space<vmem>>, vector<128x128xbf16>
    %cst = arith.constant dense<0.000000e+00> : vector<64x128xf32>
    %2 = tpu.matmul %0, %1, %cst {dimension_numbers = #tpu.dot_dimension_numbers<[1], [0], [0], [1], [0, 0, 1, 1], [], []>} : vector<64x128xbf16>, vector<128x128xbf16>, vector<64x128xf32> -> vector<64x128xf32>
    %3 = math.tanh %2 : vector<64x128xf32>
    %4 = arith.truncf %3 : vector<64x128xf32> to vector<64x128xbf16>
    %c0_3 = arith.constant 0 : index
    %c0_4 = arith.constant 0 : index
    %5 = vector.load %arg3[%c0_3, %c0_4] : memref<128x256xbf16, #tpu.memory_space<vmem>>, vector<128x256xbf16>
    %cst_5 = arith.constant dense<0.000000e+00> : vector<64x256xf32>
    %6 = tpu.matmul %4, %5, %cst_5 {dimension_numbers = #tpu.dot_dimension_numbers<[1], [0], [0], [1], [0, 0, 1, 1], [], []>} : vector<64x128xbf16>, vector<128x256xbf16>, vector<64x256xf32> -> vector<64x256xf32>
    %c0_6 = arith.constant 0 : index
    %c0_7 = arith.constant 0 : index
    %7 = vector.load %arg4[%c0_6, %c0_7] : memref<1x256xf32, #tpu.memory_space<vmem>>, vector<1x256xf32>
    %8 = vector.broadcast %7 : vector<1x256xf32> to vector<64x256xf32>
    %9 = arith.addf %6, %8 : vector<64x256xf32>
    %10 = math.tanh %9 : vector<64x256xf32>
    %c0_8 = arith.constant 0 : index
    %c0_9 = arith.constant 0 : index
    %11 = vector.load %arg5[%c0_8, %c0_9] : memref<64x256xf32, #tpu.memory_space<vmem>>, vector<64x256xf32>
    tpu.vector_store %arg5[%c0_8, %c0_9], %10 {strides = array<i32>} : memref<64x256xf32, #tpu.memory_space<vmem>>, vector<64x256xf32>,
    return
  }
  func.func @transform_0(%arg0: i32) -> (i32, i32) {
    %c0_i32 = arith.constant 0 : i32
    %c0_i32_0 = arith.constant 0 : i32
    return %arg0, %c0_i32 : i32, i32
  }
  func.func @transform_1(%arg0: i32) -> (i32, i32) {
    %c0_i32 = arith.constant 0 : i32
    %c0_i32_0 = arith.constant 0 : i32
    %c0_i32_1 = arith.constant 0 : i32
    return %c0_i32, %c0_i32_0 : i32, i32
  }
  func.func @transform_2(%arg0: i32) -> (i32, i32) {
    %c0_i32 = arith.constant 0 : i32
    %c0_i32_0 = arith.constant 0 : i32
    %c0_i32_1 = arith.constant 0 : i32
    return %c0_i32, %c0_i32_0 : i32, i32
  }
  func.func @transform_3(%arg0: i32) -> (i32, i32) {
    %c0_i32 = arith.constant 0 : i32
    %c0_i32_0 = arith.constant 0 : i32
    %c0_i32_1 = arith.constant 0 : i32
    return %c0_i32, %c0_i32_0 : i32, i32
  }
  func.func @transform_4(%arg0: i32) -> (i32, i32) {
    %c0_i32 = arith.constant 0 : i32
    %c0_i32_0 = arith.constant 0 : i32
    return %arg0, %c0_i32 : i32, i32
  }
}

</mosaic_0001>

<llo_original>
// kernel: cgtn_forward_all.1
$region0: #{cgtn_forward_all.1}
  #allocation0 [shape = 'u32[]', space=smem, size = 0x4, offset = 0x4, fixed_abs, tag = 'smem constant byte address 0x4 - core index']
  #allocation1 [shape = 'u32[72,128]{1,0:T(1,128)}', space=vmem, size = 0x9000, scoped, tag = 'internal scratch']
  %s0 = inlined_call_operand.hbm [shape: bf16[64,128], index: 0, kind: input, shape index: {}]
  %s1 = inlined_call_operand.hbm [shape: bf16[128,128], index: 1, kind: input, shape index: {}]
  %s2 = inlined_call_operand.hbm [shape: bf16[128,256], index: 2, kind: input, shape index: {}]
  %s3 = inlined_call_operand.vmem [shape: f32[1,256], index: 3, kind: input, shape index: {}]
  %s4 = inlined_call_operand.vmem [shape: f32[64,256], index: 4, kind: output, shape index: {}]
  %s5 = sld [smem:[#allocation0]]
  $region38: #{cgtn_forward_all.1} parent=0
    _
  %s7 = ssub.s32 1, %s5
  %s8 = scalar_select 0, %s7, %s5
  $region1: #{cgtn_forward_all.1} parent=0
    #allocation2 [shape = 'u8[16384]{0}', space=vmem, size = 0x4000, scoped, tag = 'input window, operand 0, single buffered']
    #allocation3 [shape = 's32[1]{0}', space=sflag, size = 0x4, scoped, tag = 'scoped memory for cgtn_forward_all.1']
    #allocation4 [shape = 'u8[32768]{0}', space=vmem, size = 0x8000, scoped, tag = 'input window, operand 1, single buffered']
    #allocation5 [shape = 's32[1]{0}', space=sflag, size = 0x4, scoped, tag = 'scoped memory for cgtn_forward_all.1']
    #allocation6 [shape = 'u8[65536]{0}', space=vmem, size = 0x10000, scoped, tag = 'input window, operand 2, single buffered']
    %9 = vsyncpa [#allocation3], 0
    %10 = vsyncpa [#allocation5], 0
    // Predicated region
    $region2: #{cgtn_forward_all.1} parent=1 // pred_check
      _
    $region3: #{cgtn_forward_all.1} parent=1 // pred_check_branch
      %12 = sbr.rel (0) target = $region5
    $region4: #{cgtn_forward_all.1} parent=1 // pred_region
      %14 = vsyncadd [#allocation3], 0
      %s15 = sshll.u32 %s0, 4
      %s16 = int_to_ptr.hbm [resolvable:$true] %s15
      %s17 = sshll.u32 [#allocation2], 4
      %s18 = int_to_ptr.vmem [resolvable:$true] %s17
      %23 = dma.hbm_to_vmem [thread:$0]  %s16, 512, %s18, [#allocation3], 64, 64, 4
    $region5: #{cgtn_forward_all.1} parent=1 // pred_fallthru
      _
    // Predicated region
    $region6: #{cgtn_forward_all.1} parent=1 // pred_check
      _
    $region7: #{cgtn_forward_all.1} parent=1 // pred_check_branch
      %25 = sbr.rel (0) target = $region9
    $region8: #{cgtn_forward_all.1} parent=1 // pred_region
      %27 = vsyncadd [#allocation5], 0
      %s28 = sshll.u32 %s1, 4
      %s29 = int_to_ptr.hbm [resolvable:$true] %s28
      %s30 = sshll.u32 [#allocation4], 4
      %s31 = int_to_ptr.vmem [resolvable:$true] %s30
      %36 = dma.hbm_to_vmem [thread:$0]  %s29, 1024, %s31, [#allocation5], 64, 64, 4
    $region9: #{cgtn_forward_all.1} parent=1 // pred_fallthru
      _
    // Predicated region
    $region10: #{cgtn_forward_all.1} parent=1 // pred_check
      _
    $region11: #{cgtn_forward_all.1} parent=1 // pred_check_branch
      %38 = sbr.rel (0) target = $region13
    $region12: #{cgtn_forward_all.1} parent=1 // pred_region
      %40 = vsyncadd [#allocation5], 0
      %s41 = sshll.u32 %s2, 4
      %s42 = int_to_ptr.hbm [resolvable:$true] %s41
      %s43 = sshll.u32 [#allocation6], 4
      %s44 = int_to_ptr.vmem [resolvable:$true] %s43
      %49 = dma.hbm_to_vmem [thread:$0]  %s42, 2048, %s44, [#allocation5], 128, 128, 8
    $region13: #{cgtn_forward_all.1} parent=1 // pred_fallthru
      _
    // Predicated region
    $region14: #{cgtn_forward_all.1} parent=1 // pred_check
      _
    $region15: #{cgtn_forward_all.1} parent=1 // pred_check_branch
      %51 = sbr.rel (0) target = $region17
    $region16: #{cgtn_forward_all.1} parent=1 // pred_region
      _
    $region17: #{cgtn_forward_all.1} parent=1 // pred_fallthru
      _
    // Predicated region
    $region18: #{cgtn_forward_all.1} parent=1 // pred_check
      _
    $region19: #{cgtn_forward_all.1} parent=1 // pred_check_branch
      %53 = sbr.rel (0) target = $region21
    $region20: #{cgtn_forward_all.1} parent=1 // pred_region
      %55 = dma.done [#allocation3], 512
    $region21: #{cgtn_forward_all.1} parent=1 // pred_fallthru
      _
    // Predicated region
    $region22: #{cgtn_forward_all.1} parent=1 // pred_check
      _
    $region23: #{cgtn_forward_all.1} parent=1 // pred_check_branch
      %57 = sbr.rel (0) target = $region25
    $region24: #{cgtn_forward_all.1} parent=1 // pred_region
      %59 = dma.done [#allocation5], 1024
    $region25: #{cgtn_forward_all.1} parent=1 // pred_fallthru
      _
    // Predicated region
    $region26: #{cgtn_forward_all.1} parent=1 // pred_check
      _
    $region27: #{cgtn_forward_all.1} parent=1 // pred_check_branch
      %61 = sbr.rel (0) target = $region29
    $region28: #{cgtn_forward_all.1} parent=1 // pred_region
      %63 = dma.done [#allocation5], 2048
    $region29: #{cgtn_forward_all.1} parent=1 // pred_fallthru
      _
    %v64 = vld [vmem:[#allocation2] sm:$0xf]
    %v65 = vld [vmem:[#allocation2 + $0x4] sm:$0xf]
    %v66 = vld [vmem:[#allocation2 + $0x8] sm:$0xf]
    %v67 = vld [vmem:[#allocation2 + $0xc] sm:$0xf]
    %v68 = vld [vmem:[#allocation2 + $0x10] sm:$0xf]
    %v69 = vld [vmem:[#allocation2 + $0x14] sm:$0xf]
    %v70 = vld [vmem:[#allocation2 + $0x18] sm:$0xf]
    %v71 = vld [vmem:[#allocation2 + $0x1c] sm:$0xf]
    %v72 = vld [vmem:[#allocation4] sm:$0xf]
    %v73 = vld [vmem:[#allocation4 + $0x4] sm:$0xf]
    %v74 = vld [vmem:[#allocation4 + $0x8] sm:$0xf]
    %v75 = vld [vmem:[#allocation4 + $0xc] sm:$0xf]
    %v76 = vld [vmem:[#allocation4 + $0x10] sm:$0xf]
    %v77 = vld [vmem:[#allocation4 + $0x14] sm:$0xf]
    %v78 = vld [vmem:[#allocation4 + $0x18] sm:$0xf]
    %v79 = vld [vmem:[#allocation4 + $0x1c] sm:$0xf]
    %v80 = vld [vmem:[#allocation4 + $0x20] sm:$0xf]
    %v81 = vld [vmem:[#allocation4 + $0x24] sm:$0xf]
    %v82 = vld [vmem:[#allocation4 + $0x28] sm:$0xf]
    %v83 = vld [vmem:[#allocation4 + $0x2c] sm:$0xf]
    %v84 = vld [vmem:[#allocation4 + $0x30] sm:$0xf]
    %v85 = vld [vmem:[#allocation4 + $0x34] sm:$0xf]
    %v86 = vld [vmem:[#allocation4 + $0x38] sm:$0xf]
    %v87 = vld [vmem:[#allocation4 + $0x3c] sm:$0xf]
    %v96 = vunpack.c.l.b16 %v64
    %v97 = vunpack.c.l.b16 %v65
    %v98 = vunpack.c.l.b16 %v66
    %v99 = vunpack.c.l.b16 %v67
    %v100 = vunpack.c.l.b16 %v68
    %v101 = vunpack.c.l.b16 %v69
    %v102 = vunpack.c.l.b16 %v70
    %v103 = vunpack.c.l.b16 %v71
    %v104 = vpack.c.b16 %v97, %v96
    %v105 = vpack.c.b16 %v99, %v98
    %v106 = vpack.c.b16 %v101, %v100
    %v107 = vpack.c.b16 %v103, %v102
    %v128 = vunpack.c.l.b16 %v72
    %v129 = vunpack.c.l.b16 %v73
    %v130 = vunpack.c.l.b16 %v74
    %v131 = vunpack.c.l.b16 %v75
    %v132 = vunpack.c.l.b16 %v76
    %v133 = vunpack.c.l.b16 %v77
    %v134 = vunpack.c.l.b16 %v78
    %v135 = vunpack.c.l.b16 %v79
    %v136 = vunpack.c.l.b16 %v80
    %v137 = vunpack.c.l.b16 %v81
    %v138 = vunpack.c.l.b16 %v82
    %v139 = vunpack.c.l.b16 %v83
    %v140 = vunpack.c.l.b16 %v84
    %v141 = vunpack.c.l.b16 %v85
    %v142 = vunpack.c.l.b16 %v86
    %v143 = vunpack.c.l.b16 %v87
    %v144 = vpack.c.b16 %v129, %v128
    %v145 = vpack.c.b16 %v131, %v130
    %v146 = vpack.c.b16 %v133, %v132
    %v147 = vpack.c.b16 %v135, %v134
    %v148 = vpack.c.b16 %v137, %v136
    %v149 = vpack.c.b16 %v139, %v138
    %v150 = vpack.c.b16 %v141, %v140
    %v151 = vpack.c.b16 %v143, %v142
    %160 = vmatpush.bf16.msra.mxu0 %v151
    %161 = vmatpush.bf16.msra.mxu0 %v150
    %162 = vmatpush.bf16.msra.mxu0 %v149
    %163 = vmatpush.bf16.msra.mxu0 %v148
    %164 = vmatpush.bf16.msra.mxu0 %v147
    %165 = vmatpush.bf16.msra.mxu0 %v146
    %166 = vmatpush.bf16.msra.mxu0 %v145
    %167 = vmatpush.bf16.msra.mxu0 %v144
    %168 = vmatmul.bf16.gmra.mxu0 %v104
    %v169 = vpop.f32.mrf.mxu0
    %v170 = vadd.f32 0.0, %v169
    %v171 = vpop.f32.mrf.mxu0
    %v172 = vadd.f32 0.0, %v171
    %173 = vmatmul.bf16.gmra.mxu0 %v105
    %v174 = vpop.f32.mrf.mxu0
    %v175 = vadd.f32 0.0, %v174
    %v176 = vpop.f32.mrf.mxu0
    %v177 = vadd.f32 0.0, %v176
    %178 = vmatmul.bf16.gmra.mxu0 %v106
    %v179 = vpop.f32.mrf.mxu0
    %v180 = vadd.f32 0.0, %v179
    %v181 = vpop.f32.mrf.mxu0
    %v182 = vadd.f32 0.0, %v181
    %183 = vmatmul.bf16.gmra.mxu0 %v107
    %v184 = vpop.f32.mrf.mxu0
    %v185 = vadd.f32 0.0, %v184
    %v186 = vpop.f32.mrf.mxu0
    %v187 = vadd.f32 0.0, %v186
    %188 = vdwg.mxu0
    %v189 = vtanh.pop %v170
    %v190 = vtanh.pop %v172
    %v191 = vtanh.pop %v175
    %v192 = vtanh.pop %v177
    %v193 = vtanh.pop %v180
    %v194 = vtanh.pop %v182
    %v195 = vtanh.pop %v185
    %v196 = vtanh.pop %v187
    %v197 = vpack.c.bf16 %v190, %v189
    %v198 = vpack.c.bf16 %v192, %v191
    %v199 = vpack.c.bf16 %v194, %v193
    %v200 = vpack.c.bf16 %v196, %v195
    %v201 = vld [vmem:[#allocation6] sm:$0xff]
    %v202 = vld [vmem:[#allocation6 + $0x8] sm:$0xff]
    %v203 = vld [vmem:[#allocation6 + $0x10] sm:$0xff]
    %v204 = vld [vmem:[#allocation6 + $0x18] sm:$0xff]
    %v205 = vld [vmem:[#allocation6 + $0x20] sm:$0xff]
    %v206 = vld [vmem:[#allocation6 + $0x28] sm:$0xff]
    %v207 = vld [vmem:[#allocation6 + $0x30] sm:$0xff]
    %v208 = vld [vmem:[#allocation6 + $0x38] sm:$0xff]
    %v209 = vld [vmem:[#allocation6 + $0x40] sm:$0xff]
    %v210 = vld [vmem:[#allocation6 + $0x48] sm:$0xff]
    %v211 = vld [vmem:[#allocation6 + $0x50] sm:$0xff]
    %v212 = vld [vmem:[#allocation6 + $0x58] sm:$0xff]
    %v213 = vld [vmem:[#allocation6 + $0x60] sm:$0xff]
    %v214 = vld [vmem:[#allocation6 + $0x68] sm:$0xff]
    %v215 = vld [vmem:[#allocation6 + $0x70] sm:$0xff]
    %v216 = vld [vmem:[#allocation6 + $0x78] sm:$0xff]
    %v217 = vld [vmem:[%s3] sm:$0x3]
    %v219 = vperm.slane %v217, 0
    %v220 = vperm.slane %v217, 1
    %v239 = vunpack.c.l.b16 %v201
    %v240 = vunpack.c.h.b16 %v201
    %v241 = vunpack.c.l.b16 %v202
    %v242 = vunpack.c.h.b16 %v202
    %v243 = vunpack.c.l.b16 %v203
    %v244 = vunpack.c.h.b16 %v203
    %v245 = vunpack.c.l.b16 %v204
    %v246 = vunpack.c.h.b16 %v204
    %v247 = vunpack.c.l.b16 %v205
    %v248 = vunpack.c.h.b16 %v205
    %v249 = vunpack.c.l.b16 %v206
    %v250 = vunpack.c.h.b16 %v206
    %v251 = vunpack.c.l.b16 %v207
    %v252 = vunpack.c.h.b16 %v207
    %v253 = vunpack.c.l.b16 %v208
    %v254 = vunpack.c.h.b16 %v208
    %v255 = vunpack.c.l.b16 %v209
    %v256 = vunpack.c.h.b16 %v209
    %v257 = vunpack.c.l.b16 %v210
    %v258 = vunpack.c.h.b16 %v210
    %v259 = vunpack.c.l.b16 %v211
    %v260 = vunpack.c.h.b16 %v211
    %v261 = vunpack.c.l.b16 %v212
    %v262 = vunpack.c.h.b16 %v212
    %v263 = vunpack.c.l.b16 %v213
    %v264 = vunpack.c.h.b16 %v213
    %v265 = vunpack.c.l.b16 %v214
    %v266 = vunpack.c.h.b16 %v214
    %v267 = vunpack.c.l.b16 %v215
    %v268 = vunpack.c.h.b16 %v215
    %v269 = vunpack.c.l.b16 %v216
    %v270 = vunpack.c.h.b16 %v216
    %v271 = vpack.c.b16 %v241, %v239
    %v272 = vpack.c.b16 %v242, %v240
    %v273 = vpack.c.b16 %v245, %v243
    %v274 = vpack.c.b16 %v246, %v244
    %v275 = vpack.c.b16 %v249, %v247
    %v276 = vpack.c.b16 %v250, %v248
    %v277 = vpack.c.b16 %v253, %v251
    %v278 = vpack.c.b16 %v254, %v252
    %v279 = vpack.c.b16 %v257, %v255
    %v280 = vpack.c.b16 %v258, %v256
    %v281 = vpack.c.b16 %v261, %v259
    %v282 = vpack.c.b16 %v262, %v260
    %v283 = vpack.c.b16 %v265, %v263
    %v284 = vpack.c.b16 %v266, %v264
    %v285 = vpack.c.b16 %v269, %v267
    %v286 = vpack.c.b16 %v270, %v268
    %303 = vmatpush.bf16.msra.mxu0 %v285
    %304 = vmatpush.bf16.msra.mxu0 %v283
    %305 = vmatpush.bf16.msra.mxu0 %v281
    %306 = vmatpush.bf16.msra.mxu0 %v279
    %307 = vmatpush.bf16.msra.mxu0 %v277
    %308 = vmatpush.bf16.msra.mxu0 %v275
    %309 = vmatpush.bf16.msra.mxu0 %v273
    %310 = vmatpush.bf16.msra.mxu0 %v271
    %311 = vmatmul.bf16.gmra.mxu0 %v197
    %v312 = vpop.f32.mrf.mxu0
    %v313 = vadd.f32 %v219, %v312
    %v314 = vpop.f32.mrf.mxu0
    %v315 = vadd.f32 %v219, %v314
    %316 = vmatmul.bf16.gmra.mxu0 %v198
    %v317 = vpop.f32.mrf.mxu0
    %v318 = vadd.f32 %v219, %v317
    %v319 = vpop.f32.mrf.mxu0
    %v320 = vadd.f32 %v219, %v319
    %321 = vmatmul.bf16.gmra.mxu0 %v199
    %v322 = vpop.f32.mrf.mxu0
    %v323 = vadd.f32 %v219, %v322
    %v324 = vpop.f32.mrf.mxu0
    %v325 = vadd.f32 %v219, %v324
    %326 = vmatmul.bf16.gmra.mxu0 %v200
    %v327 = vpop.f32.mrf.mxu0
    %v328 = vadd.f32 %v219, %v327
    %v329 = vpop.f32.mrf.mxu0
    %v330 = vadd.f32 %v219, %v329
    %331 = vdwg.mxu0
    %332 = vmatpush.bf16.msra.mxu0 %v286
    %333 = vmatpush.bf16.msra.mxu0 %v284
    %334 = vmatpush.bf16.msra.mxu0 %v282
    %335 = vmatpush.bf16.msra.mxu0 %v280
    %336 = vmatpush.bf16.msra.mxu0 %v278
    %337 = vmatpush.bf16.msra.mxu0 %v276
    %338 = vmatpush.bf16.msra.mxu0 %v274
    %339 = vmatpush.bf16.msra.mxu0 %v272
    %340 = vmatmul.bf16.gmra.mxu0 %v197
    %v341 = vpop.f32.mrf.mxu0
    %v342 = vadd.f32 %v220, %v341
    %v343 = vpop.f32.mrf.mxu0
    %v344 = vadd.f32 %v220, %v343
    %345 = vmatmul.bf16.gmra.mxu0 %v198
    %v346 = vpop.f32.mrf.mxu0
    %v347 = vadd.f32 %v220, %v346
    %v348 = vpop.f32.mrf.mxu0
    %v349 = vadd.f32 %v220, %v348
    %350 = vmatmul.bf16.gmra.mxu0 %v199
    %v351 = vpop.f32.mrf.mxu0
    %v352 = vadd.f32 %v220, %v351
    %v353 = vpop.f32.mrf.mxu0
    %v354 = vadd.f32 %v220, %v353
    %355 = vmatmul.bf16.gmra.mxu0 %v200
    %v356 = vpop.f32.mrf.mxu0
    %v357 = vadd.f32 %v220, %v356
    %v358 = vpop.f32.mrf.mxu0
    %v359 = vadd.f32 %v220, %v358
    %360 = vdwg.mxu0
    %v361 = vtanh.pop %v313
    %v362 = vtanh.pop %v342
    %v363 = vtanh.pop %v315
    %v364 = vtanh.pop %v344
    %v365 = vtanh.pop %v318
    %v366 = vtanh.pop %v347
    %v367 = vtanh.pop %v320
    %v368 = vtanh.pop %v349
    %v369 = vtanh.pop %v323
    %v370 = vtanh.pop %v352
    %v371 = vtanh.pop %v325
    %v372 = vtanh.pop %v354
    %v373 = vtanh.pop %v328
    %v374 = vtanh.pop %v357
    %v375 = vtanh.pop %v330
    %v376 = vtanh.pop %v359
    %377 = vst [vmem:[%s4] sm:$0xff] %v361
    %378 = vst [vmem:[%s4 + $0x8] sm:$0xff] %v362
    %379 = vst [vmem:[%s4 + $0x10] sm:$0xff] %v363
    %380 = vst [vmem:[%s4 + $0x18] sm:$0xff] %v364
    %381 = vst [vmem:[%s4 + $0x20] sm:$0xff] %v365
    %382 = vst [vmem:[%s4 + $0x28] sm:$0xff] %v366
    %383 = vst [vmem:[%s4 + $0x30] sm:$0xff] %v367
    %384 = vst [vmem:[%s4 + $0x38] sm:$0xff] %v368
    %385 = vst [vmem:[%s4 + $0x40] sm:$0xff] %v369
    %386 = vst [vmem:[%s4 + $0x48] sm:$0xff] %v370
    %387 = vst [vmem:[%s4 + $0x50] sm:$0xff] %v371
    %388 = vst [vmem:[%s4 + $0x58] sm:$0xff] %v372
    %389 = vst [vmem:[%s4 + $0x60] sm:$0xff] %v373
    %390 = vst [vmem:[%s4 + $0x68] sm:$0xff] %v374
    %391 = vst [vmem:[%s4 + $0x70] sm:$0xff] %v375
    %392 = vst [vmem:[%s4 + $0x78] sm:$0xff] %v376
    // Predicated region
    $region30: #{cgtn_forward_all.1} parent=1 // pred_check
      _
    $region31: #{cgtn_forward_all.1} parent=1 // pred_check_branch
      %394 = sbr.rel (0) target = $region33
    $region32: #{cgtn_forward_all.1} parent=1 // pred_region
      _
    $region33: #{cgtn_forward_all.1} parent=1 // pred_fallthru
      _
    // Predicated region
    $region34: #{cgtn_forward_all.1} parent=1 // pred_check
      _
    $region35: #{cgtn_forward_all.1} parent=1 // pred_check_branch
      %396 = sbr.rel (0) target = $region37
    $region36: #{cgtn_forward_all.1} parent=1 // pred_region
      _
    $region37: #{cgtn_forward_all.1} parent=1 // pred_fallthru
      _
    %397 = vsyncpa [#allocation3], 1
    %398 = vsyncpa [#allocation5], 1

</llo_original>
